<compile_context>
chip_gen: v5e
topology: v5e:2x2
jax: 0.10.0
libtpu: 0.0.40
codegen_flags: <defaults>
</compile_context>

<pallas_src>
import math
import functools

import jax
import jax.numpy as jnp
from jax.experimental import pallas as pl
from jax.experimental.pallas import tpu as pltpu


def _round_up(x: int, m: int) -> int:
    return ((x + m - 1) // m) * m


def timestep_embedder_kernel(half, H_pad, t_ref, consts_ref, w1_ref, w2_ref, out_ref):
    # t_ref:      (TN, 1)           float32  (one timestep scalar per row)
    # consts_ref: (3, CW)           float32  row0=freqs[:half], row1=b1, row2=b2
    # w1_ref:     (2*half, H_pad)   float32  (cos rows then sin rows; cols zero-padded)
    # w2_ref:     (H_pad, H_pad)    float32
    # out_ref:    (TN, H_pad)       float32
    t = t_ref[...]                                  # (TN, 1)
    freqs = consts_ref[0:1, :half]                  # (1, half)
    b1 = consts_ref[1:2, :H_pad]                    # (1, H_pad)
    b2 = consts_ref[2:3, :H_pad]                    # (1, H_pad)

    args = t * freqs                                # (TN, half) broadcast outer product

    # cos/sin on the EUP; concat is at a 128-lane boundary -> pure vreg placement,
    # enabling a single K=2*half push/drain on the MXU (v6e/v7x native 256 contraction).
    emb = jnp.concatenate([jnp.cos(args), jnp.sin(args)], axis=-1)   # (TN, 2*half)

    h = jnp.dot(emb, w1_ref[...], preferred_element_type=jnp.float32) + b1

    # SiLU via the exact tanh identity: sigmoid(x) = 0.5*(tanh(x/2)+1).
    # One EUP transcendental per element instead of exp + reciprocal.
    h = h * (0.5 * (jnp.tanh(0.5 * h) + 1.0))

    out = jnp.dot(h, w2_ref[...], preferred_element_type=jnp.float32) + b2
    out_ref[...] = out.astype(out_ref.dtype)


def prepare_params(w1, b1, w2, b2, frequency_embedding_size=256, max_period=10000.0):
    """One-time (module-init) prep: pad/pack weights + freqs into kernel layout.

    w1: (frequency_embedding_size, hidden)  [i.e. PyTorch Linear weight, transposed]
    b1, b2: (1, hidden);  w2: (hidden, hidden)
    Returns (w1p, w2p, consts).
    """
    half = frequency_embedding_size // 2
    hidden = w2.shape[1]
    H_pad = max(128, _round_up(hidden, 128))
    CW = max(_round_up(max(half, 1), 128), H_pad)
    pad_h = H_pad - hidden

    freqs = jnp.exp(
        -math.log(max_period) * jnp.arange(half, dtype=jnp.float32) / half)

    # If frequency_embedding_size is odd, PyTorch zero-pads one embedding column;
    # its w1 row multiplies zeros, so dropping rows beyond 2*half is exact.
    w1p = jnp.pad(w1.astype(jnp.float32)[: 2 * half], ((0, 0), (0, pad_h)))   # (2*half, H_pad)
    w2p = jnp.pad(w2.astype(jnp.float32), ((0, pad_h), (0, pad_h)))           # (H_pad, H_pad)

    consts = jnp.zeros((3, CW), jnp.float32)
    consts = consts.at[0, :half].set(freqs)
    consts = consts.at[1, :hidden].set(b1.astype(jnp.float32).reshape(hidden))
    consts = consts.at[2, :hidden].set(b2.astype(jnp.float32).reshape(hidden))
    return w1p, w2p, consts


@functools.partial(
    jax.jit,
    static_argnames=("frequency_embedding_size", "hidden_size", "row_tile"))
def timestep_embedder_forward(t, w1p, w2p, consts, *, frequency_embedding_size,
                              hidden_size, row_tile=1024):
    """t: (N,) float timesteps.  w1p/w2p/consts from prepare_params().
    Returns (N, hidden_size) float32."""
    N = t.shape[0]
    half = frequency_embedding_size // 2
    H_pad = w2p.shape[1]
    CW = consts.shape[1]

    # ---- 1-D grid over N; weights/consts stay VMEM-resident (single-buffered). ----
    TN = min(row_tile, _round_up(N, 8))
    N_pad = _round_up(N, TN)
    t2 = jnp.pad(t.astype(jnp.float32).reshape(N, 1), ((0, N_pad - N), (0, 0)))
    grid = (N_pad // TN,)

    resident = lambda shape: pl.BlockSpec(
        shape, lambda i: (0, 0), pipeline_mode=pl.Buffered(1))

    # Explicit VMEM budget (double-buffered t/out + single-buffered weights),
    # capped at 64 MiB so the same sizing is legal on v7x.
    need_bytes = 4 * (2 * TN * 1 + 2 * TN * H_pad
                      + 2 * half * H_pad + H_pad * H_pad + 3 * CW)
    vmem_limit = min(64 << 20, max(32 << 20, 2 * need_bytes))

    out = pl.pallas_call(
        functools.partial(timestep_embedder_kernel, half, H_pad),
        out_shape=jax.ShapeDtypeStruct((N_pad, H_pad), jnp.float32),
        grid=grid,
        in_specs=[
            pl.BlockSpec((TN, 1), lambda i: (i, 0)),   # t (double-buffered)
            resident((3, CW)),                         # freqs + b1 + b2
            resident((2 * half, H_pad)),               # w1
            resident((H_pad, H_pad)),                  # w2
        ],
        out_specs=pl.BlockSpec((TN, H_pad), lambda i: (i, 0)),
        compiler_params=pltpu.CompilerParams(
            dimension_semantics=("parallel",),
            vmem_limit_bytes=vmem_limit),
    )(t2, consts, w1p, w2p)

    # Padded ROWS (N..N_pad-1) contain garbage (cos(0)=1 path) and padded
    # COLUMNS are exact zeros; both are dropped here.
    return out[:N, :hidden_size]


def reference_forward(t, w1, b1, w2, b2, frequency_embedding_size=256,
                      max_period=10000.0):
    """Pure-JAX reference mirroring the PyTorch module semantics."""
    half = frequency_embedding_size // 2
    freqs = jnp.exp(
        -math.log(max_period) * jnp.arange(half, dtype=jnp.float32) / half)
    args = t.astype(jnp.float32)[:, None] * freqs[None]
    emb = jnp.concatenate([jnp.cos(args), jnp.sin(args)], axis=-1)
    if frequency_embedding_size % 2:
        emb = jnp.concatenate([emb, jnp.zeros_like(emb[:, :1])], axis=-1)
    h = emb @ w1 + b1
    h = h * jax.nn.sigmoid(h)
    return h @ w2 + b2


if __name__ == "__main__":
    hidden_size = 32
    frequency_embedding_size = 256
    N = 8  # batch of timesteps

    key = jax.random.PRNGKey(0)
    k_t, k_w1, k_b1, k_w2, k_b2 = jax.random.split(key, 5)

    # Timesteps: positive scalars, e.g. diffusion steps in [0, 1000).
    t = jax.random.uniform(k_t, (N,), dtype=jnp.float32) * 1000.0

    # Parameters stored as (in, out); a PyTorch Linear weight would be transposed.
    lim1 = 1.0 / math.sqrt(frequency_embedding_size)
    w1 = jax.random.uniform(k_w1, (frequency_embedding_size, hidden_size),
                            minval=-lim1, maxval=lim1, dtype=jnp.float32)
    b1 = jax.random.uniform(k_b1, (1, hidden_size),
                            minval=-lim1, maxval=lim1, dtype=jnp.float32)
    lim2 = 1.0 / math.sqrt(hidden_size)
    w2 = jax.random.uniform(k_w2, (hidden_size, hidden_size),
                            minval=-lim2, maxval=lim2, dtype=jnp.float32)
    b2 = jax.random.uniform(k_b2, (1, hidden_size),
                            minval=-lim2, maxval=lim2, dtype=jnp.float32)

    # One-time, module-init-style weight packing (hoisted out of the forward).
    w1p, w2p, consts = prepare_params(
        w1, b1, w2, b2, frequency_embedding_size=frequency_embedding_size)

    out = timestep_embedder_forward(
        t, w1p, w2p, consts,
        frequency_embedding_size=frequency_embedding_size,
        hidden_size=hidden_size)
    out = jax.block_until_ready(out)

    ref = reference_forward(t, w1, b1, w2, b2,
                            frequency_embedding_size=frequency_embedding_size)
    assert out.shape == (N, hidden_size)
    assert jnp.allclose(out, ref, atol=1e-4, rtol=1e-4), "mismatch vs reference"

    print("KERNEL_OK")
</pallas_src>

<mosaic_0001>
module attributes {stable_mosaic.version = 11 : i64} {
  func.func @timestep_embedder_kernel(%arg0: i32, %arg1: memref<8x1xf32, #tpu.memory_space<vmem>>, %arg2: memref<3x128xf32, #tpu.memory_space<vmem>>, %arg3: memref<256x128xf32, #tpu.memory_space<vmem>>, %arg4: memref<128x128xf32, #tpu.memory_space<vmem>>, %arg5: memref<8x128xf32, #tpu.memory_space<vmem>>) attributes {dimension_semantics = [#tpu.dimension_semantics<parallel>], iteration_bounds = array<i64: 1>, scalar_prefetch = 0 : i64, scratch_operands = 0 : i64, tpu.core_type = #tpu.core_type<tc>, window_params = [{transform_indices = @transform_0, window_bounds = array<i64: 8, 1>}, {pipeline_mode = #tpu.pipeline_mode<synchronous>, transform_indices = @transform_1, window_bounds = array<i64: 3, 128>}, {pipeline_mode = #tpu.pipeline_mode<synchronous>, transform_indices = @transform_2, window_bounds = array<i64: 256, 128>}, {pipeline_mode = #tpu.pipeline_mode<synchronous>, transform_indices = @transform_3, window_bounds = array<i64: 128, 128>}, {transform_indices = @transform_4, window_bounds = array<i64: 8, 128>}]} {
    %c0 = arith.constant 0 : index
    %c0_0 = arith.constant 0 : index
    %0 = vector.load %arg1[%c0, %c0_0] : memref<8x1xf32, #tpu.memory_space<vmem>>, vector<8x1xf32>
    %c0_1 = arith.constant 0 : index
    %c0_2 = arith.constant 0 : index
    %1 = vector.load %arg2[%c0_1, %c0_2] : memref<3x128xf32, #tpu.memory_space<vmem>>, vector<1x128xf32>
    %c1 = arith.constant 1 : index
    %c0_3 = arith.constant 0 : index
    %2 = vector.load %arg2[%c1, %c0_3] : memref<3x128xf32, #tpu.memory_space<vmem>>, vector<1x128xf32>
    %c2 = arith.constant 2 : index
    %c0_4 = arith.constant 0 : index
    %3 = vector.load %arg2[%c2, %c0_4] : memref<3x128xf32, #tpu.memory_space<vmem>>, vector<1x128xf32>
    %4 = vector.broadcast %0 : vector<8x1xf32> to vector<8x128xf32>
    %5 = vector.broadcast %1 : vector<1x128xf32> to vector<8x128xf32>
    %6 = arith.mulf %4, %5 : vector<8x128xf32>
    %7 = math.cos %6 : vector<8x128xf32>
    %8 = math.sin %6 : vector<8x128xf32>
    %9 = tpu.concatenate %7, %8 in 1 : vector<8x128xf32>, vector<8x128xf32> -> vector<8x256xf32>
    %c0_5 = arith.constant 0 : index
    %c0_6 = arith.constant 0 : index
    %10 = vector.load %arg3[%c0_5, %c0_6] : memref<256x128xf32, #tpu.memory_space<vmem>>, vector<256x128xf32>
    %cst = arith.constant dense<0.000000e+00> : vector<8x128xf32>
    %11 = tpu.matmul %9, %10, %cst {dimension_numbers = #tpu.dot_dimension_numbers<[1], [0], [0], [1], [0, 0, 1, 1], [], []>} : vector<8x256xf32>, vector<256x128xf32>, vector<8x128xf32> -> vector<8x128xf32>
    %12 = vector.broadcast %2 : vector<1x128xf32> to vector<8x128xf32>
    %13 = arith.addf %11, %12 : vector<8x128xf32>
    %cst_7 = arith.constant 5.000000e-01 : f32
    %14 = vector.broadcast %cst_7 : f32 to vector<8x128xf32>
    %15 = arith.mulf %14, %13 : vector<8x128xf32>
    %16 = math.tanh %15 : vector<8x128xf32>
    %cst_8 = arith.constant 1.000000e+00 : f32
    %17 = vector.broadcast %cst_8 : f32 to vector<8x128xf32>
    %18 = arith.addf %16, %17 : vector<8x128xf32>
    %cst_9 = arith.constant 5.000000e-01 : f32
    %19 = vector.broadcast %cst_9 : f32 to vector<8x128xf32>
    %20 = arith.mulf %19, %18 : vector<8x128xf32>
    %21 = arith.mulf %13, %20 : vector<8x128xf32>
    %c0_10 = arith.constant 0 : index
    %c0_11 = arith.constant 0 : index
    %22 = vector.load %arg4[%c0_10, %c0_11] : memref<128x128xf32, #tpu.memory_space<vmem>>, vector<128x128xf32>
    %cst_12 = arith.constant dense<0.000000e+00> : vector<8x128xf32>
    %23 = tpu.matmul %21, %22, %cst_12 {dimension_numbers = #tpu.dot_dimension_numbers<[1], [0], [0], [1], [0, 0, 1, 1], [], []>} : vector<8x128xf32>, vector<128x128xf32>, vector<8x128xf32> -> vector<8x128xf32>
    %24 = vector.broadcast %3 : vector<1x128xf32> to vector<8x128xf32>
    %25 = arith.addf %23, %24 : vector<8x128xf32>
    %c0_13 = arith.constant 0 : index
    %c0_14 = arith.constant 0 : index
    %26 = vector.load %arg5[%c0_13, %c0_14] : memref<8x128xf32, #tpu.memory_space<vmem>>, vector<8x128xf32>
    tpu.vector_store %arg5[%c0_13, %c0_14], %25 {strides = array<i32>} : memref<8x128xf32, #tpu.memory_space<vmem>>, vector<8x128xf32>,
    return
  }
  func.func @transform_0(%arg0: i32) -> (i32, i32) {
    %c0_i32 = arith.constant 0 : i32
    %c0_i32_0 = arith.constant 0 : i32
    return %arg0, %c0_i32 : i32, i32
  }
  func.func @transform_1(%arg0: i32) -> (i32, i32) {
    %c0_i32 = arith.constant 0 : i32
    %c0_i32_0 = arith.constant 0 : i32
    %c0_i32_1 = arith.constant 0 : i32
    return %c0_i32, %c0_i32_0 : i32, i32
  }
  func.func @transform_2(%arg0: i32) -> (i32, i32) {
    %c0_i32 = arith.constant 0 : i32
    %c0_i32_0 = arith.constant 0 : i32
    %c0_i32_1 = arith.constant 0 : i32
    return %c0_i32, %c0_i32_0 : i32, i32
  }
  func.func @transform_3(%arg0: i32) -> (i32, i32) {
    %c0_i32 = arith.constant 0 : i32
    %c0_i32_0 = arith.constant 0 : i32
    %c0_i32_1 = arith.constant 0 : i32
    return %c0_i32, %c0_i32_0 : i32, i32
  }
  func.func @transform_4(%arg0: i32) -> (i32, i32) {
    %c0_i32 = arith.constant 0 : i32
    %c0_i32_0 = arith.constant 0 : i32
    return %arg0, %c0_i32 : i32, i32
  }
}

</mosaic_0001>

<llo_original>
// kernel: timestep_embedder_forward.1
$region0: #{timestep_embedder_forward.1}
  #allocation0 [shape = 'u32[]', space=smem, size = 0x4, offset = 0x4, fixed_abs, tag = 'smem constant byte address 0x4 - core index']
  #allocation1 [shape = 'u32[72,128]{1,0:T(1,128)}', space=vmem, size = 0x9000, scoped, tag = 'internal scratch']
  %s0 = inlined_call_operand.vmem [shape: f32[8,1], index: 0, kind: input, shape index: {}]
  %s1 = inlined_call_operand.vmem [shape: f32[3,128], index: 1, kind: input, shape index: {}]
  %s2 = inlined_call_operand.hbm [shape: f32[256,128], index: 2, kind: input, shape index: {}]
  %s3 = inlined_call_operand.hbm [shape: f32[128,128], index: 3, kind: input, shape index: {}]
  %s4 = inlined_call_operand.hbm [shape: f32[8,128], index: 4, kind: output, shape index: {}]
  %s5 = sld [smem:[#allocation0]]
  $region34: #{timestep_embedder_forward.1} parent=0
    _
  %s7 = ssub.s32 1, %s5
  %s8 = scalar_select 0, %s7, %s5
  $region1: #{timestep_embedder_forward.1} parent=0
    #allocation2 [shape = 'u8[131072]{0}', space=vmem, size = 0x20000, scoped, tag = 'input window, operand 2, single buffered']
    #allocation3 [shape = 's32[1]{0}', space=sflag, size = 0x4, scoped, tag = 'scoped memory for timestep_embedder_forward.1']
    #allocation4 [shape = 's32[1]{0}', space=sflag, size = 0x4, scoped, tag = 'scoped memory for timestep_embedder_forward.1']
    #allocation5 [shape = 'u8[65536]{0}', space=vmem, size = 0x10000, scoped, tag = 'input window, operand 3, single buffered']
    #allocation6 [shape = 's32[1]{0}', space=sflag, size = 0x4, scoped, tag = 'scoped memory for timestep_embedder_forward.1']
    #allocation7 [shape = 'u8[4096]{0}', space=vmem, size = 0x1000, scoped, tag = 'output window, operand 0, single buffered']
    %9 = vsyncpa [#allocation3], 0
    %10 = vsyncpa [#allocation6], 0
    %11 = vsyncpa [#allocation4], 0
    // Predicated region
    $region2: #{timestep_embedder_forward.1} parent=1 // pred_check
      _
    $region3: #{timestep_embedder_forward.1} parent=1 // pred_check_branch
      %13 = sbr.rel (0) target = $region5
    $region4: #{timestep_embedder_forward.1} parent=1 // pred_region
      _
    $region5: #{timestep_embedder_forward.1} parent=1 // pred_fallthru
      _
    // Predicated region
    $region6: #{timestep_embedder_forward.1} parent=1 // pred_check
      _
    $region7: #{timestep_embedder_forward.1} parent=1 // pred_check_branch
      %15 = sbr.rel (0) target = $region9
    $region8: #{timestep_embedder_forward.1} parent=1 // pred_region
      _
    $region9: #{timestep_embedder_forward.1} parent=1 // pred_fallthru
      _
    // Predicated region
    $region10: #{timestep_embedder_forward.1} parent=1 // pred_check
      _
    $region11: #{timestep_embedder_forward.1} parent=1 // pred_check_branch
      %17 = sbr.rel (0) target = $region13
    $region12: #{timestep_embedder_forward.1} parent=1 // pred_region
      %19 = vsyncadd [#allocation3], 0
      %s20 = sshll.u32 %s2, 4
      %s21 = int_to_ptr.hbm [resolvable:$true] %s20
      %s22 = sshll.u32 [#allocation2], 4
      %s23 = int_to_ptr.vmem [resolvable:$true] %s22
      %28 = dma.hbm_to_vmem [thread:$0]  %s21, 4096, %s23, [#allocation3], 128, 128, 8
    $region13: #{timestep_embedder_forward.1} parent=1 // pred_fallthru
      _
    // Predicated region
    $region14: #{timestep_embedder_forward.1} parent=1 // pred_check
      _
    $region15: #{timestep_embedder_forward.1} parent=1 // pred_check_branch
      %30 = sbr.rel (0) target = $region17
    $region16: #{timestep_embedder_forward.1} parent=1 // pred_region
      %32 = vsyncadd [#allocation6], 0
      %s33 = sshll.u32 %s3, 4
      %s34 = int_to_ptr.hbm [resolvable:$true] %s33
      %s35 = sshll.u32 [#allocation5], 4
      %s36 = int_to_ptr.vmem [resolvable:$true] %s35
      %41 = dma.hbm_to_vmem [thread:$0]  %s34, 2048, %s36, [#allocation6], 128, 128, 8
    $region17: #{timestep_embedder_forward.1} parent=1 // pred_fallthru
      _
    // Predicated region
    $region18: #{timestep_embedder_forward.1} parent=1 // pred_check
      _
    $region19: #{timestep_embedder_forward.1} parent=1 // pred_check_branch
      %43 = sbr.rel (0) target = $region21
    $region20: #{timestep_embedder_forward.1} parent=1 // pred_region
      %45 = dma.done [#allocation3], 4096
    $region21: #{timestep_embedder_forward.1} parent=1 // pred_fallthru
      _
    // Predicated region
    $region22: #{timestep_embedder_forward.1} parent=1 // pred_check
      _
    $region23: #{timestep_embedder_forward.1} parent=1 // pred_check_branch
      %47 = sbr.rel (0) target = $region25
    $region24: #{timestep_embedder_forward.1} parent=1 // pred_region
      %49 = dma.done [#allocation6], 2048
    $region25: #{timestep_embedder_forward.1} parent=1 // pred_fallthru
      _
    %v50 = vld [vmem:[%s0] sm:$0xff]
    %v51 = vld [vmem:[%s1] sm:$0x1]
    %v52 = vld [vmem:[%s1 + $0x1] sm:$0x1]
    %v53 = vld [vmem:[%s1 + $0x2] sm:$0x1]
    %55 = vset.pattern.permute.xlu0 0
    %56 = vperm.xlu0 %55, %v50
    %v57 = vpop.permute.xlu0 %56
    %v59 = vperm.slane %v51, 0
    %v60 = vmul.f32 %v57, %v59
    %v61 = vand.u32 2147483647, %v60
    %vm62 = vcmp.le.f32.partialorder %v61, 0.7853982
    %vm63 = vcmp.lt.s32.totalorder %v60, 0
    %v64 = vand.u32 %v60, 2139095040
    %v65 = vshrl.u32 %v64, 23
    %v66 = vsub.s32 %v65, 127
    %v67 = vand.u32 2147483647, %v60
    %v68 = vand.u32 %v67, 8388607
    %v69 = vor.u32 %v68, 8388608
    %v70 = vsub.s32 0, %v69
    %v71 = vadd.s32 %v66, 1
    %vm72 = vcmp.gt.s32.totalorder %v71, 0
    %v73 = vsel %vm72, %v71, 0
    %v74 = vshrl.u32 %v73, 5
    %v75 = vand.u32 %v73, 31
    %v76 = vsub.s32 32, %v75
    %v77 = vshrl.u32 683565275, %v76
    %v78 = vshll.u32 683565275, %v75
    %v79 = vshrl.u32 2475754826, %v76
    %v80 = vor.u32 %v78, %v79
    %v81 = vshll.u32 2475754826, %v75
    %v82 = vshrl.u32 2131351028, %v76
    %v83 = vor.u32 %v81, %v82
    %v84 = vshll.u32 2131351028, %v75
    %v85 = vshrl.u32 2102212464, %v76
    %v86 = vor.u32 %v84, %v85
    %v87 = vshll.u32 2102212464, %v75
    %v88 = vshrl.u32 920167782, %v76
    %v89 = vor.u32 %v87, %v88
    %v90 = vshll.u32 920167782, %v75
    %v91 = vshrl.u32 1326507024, %v76
    %v92 = vor.u32 %v90, %v91
    %vm93 = vcmp.lt.s32.totalorder %v74, 1
    %vm94 = vcmp.lt.s32.totalorder %v74, 2
    %vm95 = vcmp.lt.s32.totalorder %v74, 3
    %vm96 = vcmp.lt.s32.totalorder %v74, 4
    %v97 = vsel %vm93, %v77, %v80
    %v98 = vsel %vm96, %v86, 2102212464
    %v99 = vsel %vm95, %v83, %v98
    %v100 = vsel %vm94, %v97, %v99
    %v101 = vsel %vm93, %v80, %v83
    %v102 = vsel %vm96, %v89, 920167782
    %v103 = vsel %vm95, %v86, %v102
    %v104 = vsel %vm94, %v101, %v103
    %v105 = vsel %vm93, %v83, %v86
    %v106 = vsel %vm96, %v92, 1326507024
    %v107 = vsel %vm95, %v89, %v106
    %v108 = vsel %vm94, %v105, %v107
    %v109 = vshll.u32 %v69, 8
    %v110 = vand.u32 %v109, 65535
    %v111 = vshrl.u32 %v109, 16
    %v112 = vand.u32 %v108, 65535
    %v113 = vshrl.u32 %v108, 16
    %v114 = vmul.u32 %v110, %v112
    %v115 = vmul.u32 %v110, %v113
    %v116 = vmul.u32 %v111, %v112
    %v117 = vmul.u32 %v111, %v113
    %v118 = vshll.u32 %v115, 16
    %v119 = vshrl.u32 %v115, 16
    %v120 = vshll.u32 %v116, 16
    %v121 = vshrl.u32 %v116, 16
    %vm122 = vc.u32 %v114, %v118
    %v123 = vsel %vm122, 1, 0
    %v124 = vadd.s32 %v114, %v118
    %v125 = vadd.s32 %v117, %v123
    %vm126 = vc.u32 %v124, %v120
    %v127 = vsel %vm126, 1, 0
    %v128 = vadd.s32 %v124, %v120
    %v129 = vadd.s32 %v125, %v127
    %v130 = vadd.s32 %v129, %v119
    %v131 = vadd.s32 %v130, %v121
    %v132 = vand.u32 %v109, 65535
    %v133 = vshrl.u32 %v109, 16
    %v134 = vand.u32 %v104, 65535
    %v135 = vshrl.u32 %v104, 16
    %v136 = vmul.u32 %v132, %v134
    %v137 = vmul.u32 %v132, %v135
    %v138 = vmul.u32 %v133, %v134
    %v139 = vmul.u32 %v133, %v135
    %v140 = vshll.u32 %v137, 16
    %v141 = vshrl.u32 %v137, 16
    %v142 = vshll.u32 %v138, 16
    %v143 = vshrl.u32 %v138, 16
    %vm144 = vc.u32 %v136, %v140
    %v145 = vsel %vm144, 1, 0
    %v146 = vadd.s32 %v136, %v140
    %v147 = vadd.s32 %v139, %v145
    %vm148 = vc.u32 %v146, %v142
    %v149 = vsel %vm148, 1, 0
    %v150 = vadd.s32 %v146, %v142
    %v151 = vadd.s32 %v147, %v149
    %v152 = vadd.s32 %v151, %v141
    %v153 = vadd.s32 %v152, %v143
    %v154 = vmul.u32 %v109, %v100
    %v155 = vadd.s32 %v131, %v150
    %vm156 = vc.u32 %v131, %v150
    %v157 = vadd.s32 %v153, 1
    %v158 = vsel %vm156, %v157, %v153
    %v159 = vadd.s32 %v154, %v158
    %v160 = vadd.s32 %v159, 536870912
    %v161 = vshrl.u32 %v160, 30
    %v162 = vshll.u32 %v161, 30
    %v163 = vsub.s32 %v159, %v162
    %vm164 = vcmp.lt.s32.totalorder %v163, 0
    %v165 = vsub.s32 0, %v163
    %v166 = vsel %vm164, %v165, %v163
    %v167 = vclz %v166
    %v168 = vsub.s32 %v167, 2
    %vm169 = vcmp.gt.s32.totalorder 0, %v168
    %v170 = vsel %vm169, 0, %v168
    %v171 = vsub.s32 32, %v170
    %v172 = vshll.u32 %v163, %v170
    %v173 = vshrl.u32 %v155, %v171
    %v174 = vor.u32 %v172, %v173
    %v175 = vsub.s32 4294967266, %v170
    %v176 = vadd.s32 %v175, 127
    %v177 = vshll.u32 %v176, 23
    %v178 = vor.u32 4788187, %v177
    %v179 = vand.u32 2147483647, %v178
    %v181 = vcvt.s32.f32 %v174
    %v182 = vmul.f32 %v181, %v179
    %v183 = vxor.u32 %v182, 2147483648
    %v184 = vsel %vm63, %v183, %v182
    %v185 = vsub.s32 4, %v161
    %v186 = vsel %vm63, %v185, %v161
    %v187 = vsel %vm62, %v60, %v184
    %v188 = vsel %vm62, 0, %v186
    %v189 = vmul.f32 %v187, %v187
    %v190 = vmul.f32 %v189, -0.001358992
    %v191 = vadd.f32 %v190, 0.041655596
    %v192 = vmul.f32 %v189, %v191
    %v193 = vadd.f32 %v192, -0.4999988
    %v194 = vmul.f32 %v189, %v193
    %v195 = vadd.f32 1.0, %v194
    %v196 = vmul.f32 %v187, %v187
    %v197 = vmul.f32 %v196, -0.00019511016
    %v198 = vadd.f32 %v197, 0.008332121
    %v199 = vmul.f32 %v196, %v198
    %v200 = vadd.f32 %v199, -0.16666654
    %v201 = vmul.f32 %v196, %v200
    %v202 = vadd.f32 %v201, 1.0
    %v203 = vmul.f32 %v202, %v187
    %vm204 = vweird.f32 %v60
    %v205 = vand.u32 %v188, 3
    %vm206 = vcmp.lt.s32.totalorder %v205, 2
    %vm207 = vcmp.eq.s32.totalorder %v205, 0
    %v208 = vxor.u32 %v203, 2147483648
    %v209 = vsel %vm207, %v195, %v208
    %vm210 = vcmp.eq.s32.totalorder %v205, 2
    %v211 = vxor.u32 %v195, 2147483648
    %v212 = vsel %vm210, %v211, %v203
    %v213 = vsel %vm206, %v209, %v212
    %v214 = vsel %vm204, nan, %v213
    %v215 = vand.u32 2147483647, %v60
    %vm216 = vcmp.le.f32.partialorder %v215, 0.7853982
    %vm217 = vcmp.lt.s32.totalorder %v60, 0
    %v218 = vand.u32 %v60, 2139095040
    %v219 = vshrl.u32 %v218, 23
    %v220 = vsub.s32 %v219, 127
    %v221 = vand.u32 2147483647, %v60
    %v222 = vand.u32 %v221, 8388607
    %v223 = vor.u32 %v222, 8388608
    %v224 = vsub.s32 0, %v223
    %v225 = vadd.s32 %v220, 1
    %vm226 = vcmp.gt.s32.totalorder %v225, 0
    %v227 = vsel %vm226, %v225, 0
    %v228 = vshrl.u32 %v227, 5
    %v229 = vand.u32 %v227, 31
    %v230 = vsub.s32 32, %v229
    %v231 = vshrl.u32 683565275, %v230
    %v232 = vshll.u32 683565275, %v229
    %v233 = vshrl.u32 2475754826, %v230
    %v234 = vor.u32 %v232, %v233
    %v235 = vshll.u32 2475754826, %v229
    %v236 = vshrl.u32 2131351028, %v230
    %v237 = vor.u32 %v235, %v236
    %v238 = vshll.u32 2131351028, %v229
    %v239 = vshrl.u32 2102212464, %v230
    %v240 = vor.u32 %v238, %v239
    %v241 = vshll.u32 2102212464, %v229
    %v242 = vshrl.u32 920167782, %v230
    %v243 = vor.u32 %v241, %v242
    %v244 = vshll.u32 920167782, %v229
    %v245 = vshrl.u32 1326507024, %v230
    %v246 = vor.u32 %v244, %v245
    %vm247 = vcmp.lt.s32.totalorder %v228, 1
    %vm248 = vcmp.lt.s32.totalorder %v228, 2
    %vm249 = vcmp.lt.s32.totalorder %v228, 3
    %vm250 = vcmp.lt.s32.totalorder %v228, 4
    %v251 = vsel %vm247, %v231, %v234
    %v252 = vsel %vm250, %v240, 2102212464
    %v253 = vsel %vm249, %v237, %v252
    %v254 = vsel %vm248, %v251, %v253
    %v255 = vsel %vm247, %v234, %v237
    %v256 = vsel %vm250, %v243, 920167782
    %v257 = vsel %vm249, %v240, %v256
    %v258 = vsel %vm248, %v255, %v257
    %v259 = vsel %vm247, %v237, %v240
    %v260 = vsel %vm250, %v246, 1326507024
    %v261 = vsel %vm249, %v243, %v260
    %v262 = vsel %vm248, %v259, %v261
    %v263 = vshll.u32 %v223, 8
    %v264 = vand.u32 %v263, 65535
    %v265 = vshrl.u32 %v263, 16
    %v266 = vand.u32 %v262, 65535
    %v267 = vshrl.u32 %v262, 16
    %v268 = vmul.u32 %v264, %v266
    %v269 = vmul.u32 %v264, %v267
    %v270 = vmul.u32 %v265, %v266
    %v271 = vmul.u32 %v265, %v267
    %v272 = vshll.u32 %v269, 16
    %v273 = vshrl.u32 %v269, 16
    %v274 = vshll.u32 %v270, 16
    %v275 = vshrl.u32 %v270, 16
    %vm276 = vc.u32 %v268, %v272
    %v277 = vsel %vm276, 1, 0
    %v278 = vadd.s32 %v268, %v272
    %v279 = vadd.s32 %v271, %v277
    %vm280 = vc.u32 %v278, %v274
    %v281 = vsel %vm280, 1, 0
    %v282 = vadd.s32 %v278, %v274
    %v283 = vadd.s32 %v279, %v281
    %v284 = vadd.s32 %v283, %v273
    %v285 = vadd.s32 %v284, %v275
    %v286 = vand.u32 %v263, 65535
    %v287 = vshrl.u32 %v263, 16
    %v288 = vand.u32 %v258, 65535
    %v289 = vshrl.u32 %v258, 16
    %v290 = vmul.u32 %v286, %v288
    %v291 = vmul.u32 %v286, %v289
    %v292 = vmul.u32 %v287, %v288
    %v293 = vmul.u32 %v287, %v289
    %v294 = vshll.u32 %v291, 16
    %v295 = vshrl.u32 %v291, 16
    %v296 = vshll.u32 %v292, 16
    %v297 = vshrl.u32 %v292, 16
    %vm298 = vc.u32 %v290, %v294
    %v299 = vsel %vm298, 1, 0
    %v300 = vadd.s32 %v290, %v294
    %v301 = vadd.s32 %v293, %v299
    %vm302 = vc.u32 %v300, %v296
    %v303 = vsel %vm302, 1, 0
    %v304 = vadd.s32 %v300, %v296
    %v305 = vadd.s32 %v301, %v303
    %v306 = vadd.s32 %v305, %v295
    %v307 = vadd.s32 %v306, %v297
    %v308 = vmul.u32 %v263, %v254
    %v309 = vadd.s32 %v285, %v304
    %vm310 = vc.u32 %v285, %v304
    %v311 = vadd.s32 %v307, 1
    %v312 = vsel %vm310, %v311, %v307
    %v313 = vadd.s32 %v308, %v312
    %v314 = vadd.s32 %v313, 536870912
    %v315 = vshrl.u32 %v314, 30
    %v316 = vshll.u32 %v315, 30
    %v317 = vsub.s32 %v313, %v316
    %vm318 = vcmp.lt.s32.totalorder %v317, 0
    %v319 = vsub.s32 0, %v317
    %v320 = vsel %vm318, %v319, %v317
    %v321 = vclz %v320
    %v322 = vsub.s32 %v321, 2
    %vm323 = vcmp.gt.s32.totalorder 0, %v322
    %v324 = vsel %vm323, 0, %v322
    %v325 = vsub.s32 32, %v324
    %v326 = vshll.u32 %v317, %v324
    %v327 = vshrl.u32 %v309, %v325
    %v328 = vor.u32 %v326, %v327
    %v329 = vsub.s32 4294967266, %v324
    %v330 = vadd.s32 %v329, 127
    %v331 = vshll.u32 %v330, 23
    %v332 = vor.u32 4788187, %v331
    %v333 = vand.u32 2147483647, %v332
    %v335 = vcvt.s32.f32 %v328
    %v336 = vmul.f32 %v335, %v333
    %v337 = vxor.u32 %v336, 2147483648
    %v338 = vsel %vm217, %v337, %v336
    %v339 = vsub.s32 4, %v315
    %v340 = vsel %vm217, %v339, %v315
    %v341 = vsel %vm216, %v60, %v338
    %v342 = vsel %vm216, 0, %v340
    %v343 = vmul.f32 %v341, %v341
    %v344 = vmul.f32 %v343, -0.001358992
    %v345 = vadd.f32 %v344, 0.041655596
    %v346 = vmul.f32 %v343, %v345
    %v347 = vadd.f32 %v346, -0.4999988
    %v348 = vmul.f32 %v343, %v347
    %v349 = vadd.f32 1.0, %v348
    %v350 = vmul.f32 %v341, %v341
    %v351 = vmul.f32 %v350, -0.00019511016
    %v352 = vadd.f32 %v351, 0.008332121
    %v353 = vmul.f32 %v350, %v352
    %v354 = vadd.f32 %v353, -0.16666654
    %v355 = vmul.f32 %v350, %v354
    %v356 = vadd.f32 %v355, 1.0
    %v357 = vmul.f32 %v356, %v341
    %vm358 = vweird.f32 %v60
    %v359 = vadd.s32 %v342, 3
    %v360 = vand.u32 %v359, 3
    %vm361 = vcmp.lt.s32.totalorder %v360, 2
    %vm362 = vcmp.eq.s32.totalorder %v360, 0
    %v363 = vxor.u32 %v357, 2147483648
    %v364 = vsel %vm362, %v349, %v363
    %vm365 = vcmp.eq.s32.totalorder %v360, 2
    %v366 = vxor.u32 %v349, 2147483648
    %v367 = vsel %vm365, %v366, %v357
    %v368 = vsel %vm361, %v364, %v367
    %v369 = vsel %vm358, nan, %v368
    %v370 = vld [vmem:[#allocation2] sm:$0xff]
    %v371 = vld [vmem:[#allocation2 + $0x8] sm:$0xff]
    %v372 = vld [vmem:[#allocation2 + $0x10] sm:$0xff]
    %v373 = vld [vmem:[#allocation2 + $0x18] sm:$0xff]
    %v374 = vld [vmem:[#allocation2 + $0x20] sm:$0xff]
    %v375 = vld [vmem:[#allocation2 + $0x28] sm:$0xff]
    %v376 = vld [vmem:[#allocation2 + $0x30] sm:$0xff]
    %v377 = vld [vmem:[#allocation2 + $0x38] sm:$0xff]
    %v378 = vld [vmem:[#allocation2 + $0x40] sm:$0xff]
    %v379 = vld [vmem:[#allocation2 + $0x48] sm:$0xff]
    %v380 = vld [vmem:[#allocation2 + $0x50] sm:$0xff]
    %v381 = vld [vmem:[#allocation2 + $0x58] sm:$0xff]
    %v382 = vld [vmem:[#allocation2 + $0x60] sm:$0xff]
    %v383 = vld [vmem:[#allocation2 + $0x68] sm:$0xff]
    %v384 = vld [vmem:[#allocation2 + $0x70] sm:$0xff]
    %v385 = vld [vmem:[#allocation2 + $0x78] sm:$0xff]
    %v386 = vld [vmem:[#allocation2 + $0x80] sm:$0xff]
    %v387 = vld [vmem:[#allocation2 + $0x88] sm:$0xff]
    %v388 = vld [vmem:[#allocation2 + $0x90] sm:$0xff]
    %v389 = vld [vmem:[#allocation2 + $0x98] sm:$0xff]
    %v390 = vld [vmem:[#allocation2 + $0xa0] sm:$0xff]
    %v391 = vld [vmem:[#allocation2 + $0xa8] sm:$0xff]
    %v392 = vld [vmem:[#allocation2 + $0xb0] sm:$0xff]
    %v393 = vld [vmem:[#allocation2 + $0xb8] sm:$0xff]
    %v394 = vld [vmem:[#allocation2 + $0xc0] sm:$0xff]
    %v395 = vld [vmem:[#allocation2 + $0xc8] sm:$0xff]
    %v396 = vld [vmem:[#allocation2 + $0xd0] sm:$0xff]
    %v397 = vld [vmem:[#allocation2 + $0xd8] sm:$0xff]
    %v398 = vld [vmem:[#allocation2 + $0xe0] sm:$0xff]
    %v399 = vld [vmem:[#allocation2 + $0xe8] sm:$0xff]
    %v400 = vld [vmem:[#allocation2 + $0xf0] sm:$0xff]
    %v401 = vld [vmem:[#allocation2 + $0xf8] sm:$0xff]
    %v402 = vperm.slane %v52, 0
    %403 = vmatpush.msra.mxu0 %v385
    %404 = vmatpush.msra.mxu0 %v384
    %405 = vmatpush.msra.mxu0 %v383
    %406 = vmatpush.msra.mxu0 %v382
    %407 = vmatpush.msra.mxu0 %v381
    %408 = vmatpush.msra.mxu0 %v380
    %409 = vmatpush.msra.mxu0 %v379
    %410 = vmatpush.msra.mxu0 %v378
    %411 = vmatpush.msra.mxu0 %v377
    %412 = vmatpush.msra.mxu0 %v376
    %413 = vmatpush.msra.mxu0 %v375
    %414 = vmatpush.msra.mxu0 %v374
    %415 = vmatpush.msra.mxu0 %v373
    %416 = vmatpush.msra.mxu0 %v372
    %417 = vmatpush.msra.mxu0 %v371
    %418 = vmatpush.msra.mxu0 %v370
    %419 = vmatmul.f32.gmra.mxu0 %v214
    %v420 = vpop.f32.mrf.mxu0
    %v421 = vadd.f32 %v402, %v420
    %422 = vdwg.mxu0
    %423 = vmatpush.msra.mxu0 %v401
    %424 = vmatpush.msra.mxu0 %v400
    %425 = vmatpush.msra.mxu0 %v399
    %426 = vmatpush.msra.mxu0 %v398
    %427 = vmatpush.msra.mxu0 %v397
    %428 = vmatpush.msra.mxu0 %v396
    %429 = vmatpush.msra.mxu0 %v395
    %430 = vmatpush.msra.mxu0 %v394
    %431 = vmatpush.msra.mxu0 %v393
    %432 = vmatpush.msra.mxu0 %v392
    %433 = vmatpush.msra.mxu0 %v391
    %434 = vmatpush.msra.mxu0 %v390
    %435 = vmatpush.msra.mxu0 %v389
    %436 = vmatpush.msra.mxu0 %v388
    %437 = vmatpush.msra.mxu0 %v387
    %438 = vmatpush.msra.mxu0 %v386
    %439 = vmatmul.f32.gmra.mxu0 %v369
    %v440 = vpop.f32.mrf.mxu0
    %v441 = vadd.f32 %v421, %v440
    %442 = vdwg.mxu0
    %v443 = vmul.f32 %v441, 0.5
    %v444 = vtanh.pop %v443
    %v445 = vadd.f32 %v444, 1.0
    %v446 = vmul.f32 %v445, 0.5
    %v447 = vmul.f32 %v441, %v446
    %v448 = vld [vmem:[#allocation5] sm:$0xff]
    %v449 = vld [vmem:[#allocation5 + $0x8] sm:$0xff]
    %v450 = vld [vmem:[#allocation5 + $0x10] sm:$0xff]
    %v451 = vld [vmem:[#allocation5 + $0x18] sm:$0xff]
    %v452 = vld [vmem:[#allocation5 + $0x20] sm:$0xff]
    %v453 = vld [vmem:[#allocation5 + $0x28] sm:$0xff]
    %v454 = vld [vmem:[#allocation5 + $0x30] sm:$0xff]
    %v455 = vld [vmem:[#allocation5 + $0x38] sm:$0xff]
    %v456 = vld [vmem:[#allocation5 + $0x40] sm:$0xff]
    %v457 = vld [vmem:[#allocation5 + $0x48] sm:$0xff]
    %v458 = vld [vmem:[#allocation5 + $0x50] sm:$0xff]
    %v459 = vld [vmem:[#allocation5 + $0x58] sm:$0xff]
    %v460 = vld [vmem:[#allocation5 + $0x60] sm:$0xff]
    %v461 = vld [vmem:[#allocation5 + $0x68] sm:$0xff]
    %v462 = vld [vmem:[#allocation5 + $0x70] sm:$0xff]
    %v463 = vld [vmem:[#allocation5 + $0x78] sm:$0xff]
    %v464 = vperm.slane %v53, 0
    %465 = vmatpush.msra.mxu0 %v463
    %466 = vmatpush.msra.mxu0 %v462
    %467 = vmatpush.msra.mxu0 %v461
    %468 = vmatpush.msra.mxu0 %v460
    %469 = vmatpush.msra.mxu0 %v459
    %470 = vmatpush.msra.mxu0 %v458
    %471 = vmatpush.msra.mxu0 %v457
    %472 = vmatpush.msra.mxu0 %v456
    %473 = vmatpush.msra.mxu0 %v455
    %474 = vmatpush.msra.mxu0 %v454
    %475 = vmatpush.msra.mxu0 %v453
    %476 = vmatpush.msra.mxu0 %v452
    %477 = vmatpush.msra.mxu0 %v451
    %478 = vmatpush.msra.mxu0 %v450
    %479 = vmatpush.msra.mxu0 %v449
    %480 = vmatpush.msra.mxu0 %v448
    %481 = vmatmul.f32.gmra.mxu0 %v447
    %v482 = vpop.f32.mrf.mxu0
    %v483 = vadd.f32 %v464, %v482
    %484 = vdwg.mxu0
    %485 = vst [vmem:[#allocation7] sm:$0xff] %v483
    // Predicated region
    $region26: #{timestep_embedder_forward.1} parent=1 // pred_check
      _
    $region27: #{timestep_embedder_forward.1} parent=1 // pred_check_branch
      %487 = sbr.rel (0) target = $region29
    $region28: #{timestep_embedder_forward.1} parent=1 // pred_region
      %489 = vsyncadd [#allocation4], 0
      %s491 = sshll.u32 [#allocation7], 4
      %s492 = int_to_ptr.vmem [resolvable:$true] %s491
      %s493 = sshll.u32 %s4, 4
      %s494 = int_to_ptr.hbm [resolvable:$true] %s493
      %496 = dma.vmem_to_hbm [thread:$0]  %s492, 128, %s494, [#allocation4]
    $region29: #{timestep_embedder_forward.1} parent=1 // pred_fallthru
      _
    // Predicated region
    $region30: #{timestep_embedder_forward.1} parent=1 // pred_check
      _
    $region31: #{timestep_embedder_forward.1} parent=1 // pred_check_branch
      %498 = sbr.rel (0) target = $region33
    $region32: #{timestep_embedder_forward.1} parent=1 // pred_region
      %500 = dma.done [#allocation4], 128
    $region33: #{timestep_embedder_forward.1} parent=1 // pred_fallthru
      _
    %501 = vsyncpa [#allocation3], 1
    %502 = vsyncpa [#allocation6], 1
    %503 = vsyncpa [#allocation4], 1

</llo_original>
